<compile_context>
chip_gen: v7x
topology: tpu7x:2x2x1
jax: 0.10.0
libtpu: 0.0.40
codegen_flags: <defaults>
</compile_context>

<pallas_src>
import math

import jax
import jax.numpy as jnp
from jax.experimental import pallas as pl
from jax.experimental.pallas import tpu as pltpu

_EPS = 1e-12


def _round_up(x, m):
    return ((x + m - 1) // m) * m


# --------------------------------------------------------------------------- kernel
def arcmargin_subcenter_kernel(x_ref, xinv_ref, w_ref, o_ref):
    # x_ref:    (B_T, IN_pad)      un-normalized feature tile (bf16 or f32)
    # xinv_ref: (B_T, 1)           f32 reciprocal feature-row L2 norms (precomputed)
    # w_ref:    (K, IN_pad, OF_T)  row-normalized weight tile (bf16 or f32)
    # o_ref:    (B_T, OF_T)        cosine output tile
    x = x_ref[...]
    k = w_ref.shape[0]
    cos_max = None
    for j in range(k):  # k is small & static -> unrolled; each dot keeps OF_T lanes
        dot_j = jax.lax.dot_general(
            x, w_ref[j],
            dimension_numbers=(((1,), (0,)), ((), ())),
            preferred_element_type=jnp.float32,
        )                                       # (B_T, OF_T) MXU matmul, f32 accumulate
        cos_max = dot_j if cos_max is None else jnp.maximum(cos_max, dot_j)
    o_ref[...] = (cos_max * xinv_ref[...]).astype(o_ref.dtype)


# ------------------------------------------------------------ one-time weight prep
def prepare_arcmargin_weight(weight, out_features, k, *, of_tile=1024, use_bf16=True):
    """One-time weight preprocessing. Cache the result across forward calls.

    Returns (w_kio, meta): w_kio has shape (k, IN_pad, OF_pad) with
      * rows L2-normalized in f32 (F.normalize folded into the weight itself),
      * contraction dim (IN) on sublanes, classes (OF) on lanes -> lane-dense output,
      * bf16 cast (optional) for MXU throughput and halved HBM weight traffic,
      * IN padded to a multiple of 128, OF padded to a multiple of the OF tile.
    """
    of_k, in_features = weight.shape
    assert of_k == out_features * k
    f32 = jnp.float32

    wf = weight.astype(f32)
    norm = jnp.sqrt(jnp.sum(wf * wf, axis=-1, keepdims=True))
    wn = wf / jnp.maximum(norm, _EPS)                 # F.normalize(weight), f32
    # torch row r = class*k + j  ->  w_kio[j, :, class]
    w_kio = jnp.transpose(wn.reshape(out_features, k, in_features), (1, 2, 0))

    compute_dtype = jnp.bfloat16 if use_bf16 else f32
    w_kio = w_kio.astype(compute_dtype)

    in_pad = _round_up(in_features, 128)
    of_t = min(of_tile, _round_up(out_features, 128))
    of_pad = _round_up(out_features, of_t)
    if in_pad != in_features or of_pad != out_features:
        w_kio = jnp.pad(w_kio, ((0, 0),
                                (0, in_pad - in_features),
                                (0, of_pad - out_features)))

    meta = dict(out_features=out_features, k=k, in_features=in_features,
                in_pad=in_pad, of_t=of_t, of_pad=of_pad, compute_dtype=compute_dtype)
    return w_kio, meta


# ---------------------------------------------------------------------- per-call path
def arcmargin_subcenter_apply(features, w_kio, meta, *, b_tile=256,
                              out_dtype=jnp.float32):
    B, in_features = features.shape
    assert in_features == meta["in_features"]
    f32 = jnp.float32
    k = meta["k"]
    in_pad = meta["in_pad"]
    of_t = meta["of_t"]
    of_pad = meta["of_pad"]
    out_features = meta["out_features"]
    compute_dtype = meta["compute_dtype"]

    # 1/max(||x_row||, eps) in f32, once per call (not per OF tile), from the
    # un-quantized features -> faithful to F.normalize in the reference.
    xf = features.astype(f32)
    x_inv = 1.0 / jnp.maximum(jnp.sqrt(jnp.sum(xf * xf, axis=-1, keepdims=True)), _EPS)

    x = features.astype(compute_dtype)
    if in_pad != in_features:
        x = jnp.pad(x, ((0, 0), (0, in_pad - in_features)))

    # Tile-size selection + VMEM budget (v7x has only 64 MiB physical VMEM).
    in_isz = jnp.dtype(compute_dtype).itemsize
    out_isz = jnp.dtype(out_dtype).itemsize

    def vmem_need(bt):
        return (2 * k * in_pad * of_t * in_isz       # double-buffered weight tile
                + 2 * bt * in_pad * in_isz           # feature tile
                + 2 * bt * 4                         # x_inv tile
                + 2 * bt * of_t * out_isz)           # output tile

    budget = 44 * 1024 * 1024
    b_t = min(b_tile, _round_up(B, 8))
    while vmem_need(b_t) > budget and b_t >= 16:
        b_t = _round_up(b_t // 2, 8)                 # shrink B tile, keep OF tile big

    b_pad = _round_up(B, b_t)
    if b_pad != B:
        x = jnp.pad(x, ((0, b_pad - B), (0, 0)))
        x_inv = jnp.pad(x_inv, ((0, b_pad - B), (0, 0)))

    vmem_limit = min(48 * 1024 * 1024,
                     max(32 * 1024 * 1024, vmem_need(b_t) + 4 * 1024 * 1024))

    # Grid order: OF (weight) is the slow/outer axis, B is the fast/inner axis ->
    # each weight tile is fetched from HBM exactly once; only the small feature /
    # x_inv blocks are re-fetched per inner step.
    grid = (of_pad // of_t, b_pad // b_t)

    out = pl.pallas_call(
        arcmargin_subcenter_kernel,
        out_shape=jax.ShapeDtypeStruct((b_pad, of_pad), out_dtype),
        grid_spec=pltpu.PrefetchScalarGridSpec(
            num_scalar_prefetch=0,
            grid=grid,
            in_specs=[
                pl.BlockSpec((b_t, in_pad), lambda j, i: (i, 0)),
                pl.BlockSpec((b_t, 1), lambda j, i: (i, 0)),
                pl.BlockSpec((k, in_pad, of_t), lambda j, i: (0, 0, j)),
            ],
            out_specs=pl.BlockSpec((b_t, of_t), lambda j, i: (i, j)),
        ),
        compiler_params=pltpu.CompilerParams(
            dimension_semantics=("parallel", "parallel"),
            vmem_limit_bytes=vmem_limit,
        ),
    )(x, x_inv, w_kio)
    return out[:B, :out_features]


def arcmargin_subcenter(features, weight, out_features, k, *, use_bf16=True,
                        b_tile=256, of_tile=1024, out_dtype=jnp.float32):
    """Convenience one-shot path. For repeated calls, prepare the weight once with
    prepare_arcmargin_weight() and reuse it with arcmargin_subcenter_apply()."""
    w_kio, meta = prepare_arcmargin_weight(weight, out_features, k,
                                           of_tile=of_tile, use_bf16=use_bf16)
    return arcmargin_subcenter_apply(features, w_kio, meta,
                                     b_tile=b_tile, out_dtype=out_dtype)


# ------------------------------------------------------------------------- reference
def _l2_normalize(v, eps=_EPS):
    norm = jnp.sqrt(jnp.sum(v * v, axis=-1, keepdims=True))
    return v / jnp.maximum(norm, eps)


def arcmargin_subcenter_ref(features, weight, out_features, k):
    xn = _l2_normalize(features.astype(jnp.float32))
    wn = _l2_normalize(weight.astype(jnp.float32))
    cos_all = jnp.dot(xn, wn.T, precision=jax.lax.Precision.HIGHEST)   # (B, OF*k)
    cos_all = cos_all.reshape(-1, out_features, k)
    return jnp.max(cos_all, axis=2)


if __name__ == "__main__":
    key = jax.random.PRNGKey(0)

    # --- config 1: module-consistent small shapes (single grid tile) -------------
    B, in_features, out_features, k = 8, 64, 16, 3
    kx, kw, key = jax.random.split(key, 3)
    features = jax.random.normal(kx, (B, in_features), dtype=jnp.float32)
    stdv = 1.0 / math.sqrt(in_features)   # reset_parameters(): uniform(-stdv, stdv)
    weight = jax.random.uniform(kw, (out_features * k, in_features),
                                dtype=jnp.float32, minval=-stdv, maxval=stdv)
    ref = arcmargin_subcenter_ref(features, weight, out_features, k)

    # Weight prepared ONCE, reused across calls (the cached-prep path).
    w_f32, meta_f32 = prepare_arcmargin_weight(weight, out_features, k,
                                               use_bf16=False)
    w_bf16, meta_bf16 = prepare_arcmargin_weight(weight, out_features, k,
                                                 use_bf16=True)

    out_f32 = jax.block_until_ready(
        arcmargin_subcenter_apply(features, w_f32, meta_f32))
    assert out_f32.shape == (B, out_features)
    assert jnp.allclose(out_f32, ref, atol=2e-3, rtol=0.0), "f32 kernel mismatch"

    out_bf16 = jax.block_until_ready(
        arcmargin_subcenter_apply(features, w_bf16, meta_bf16))
    assert jnp.allclose(out_bf16, ref, atol=3e-2, rtol=0.0), "bf16 kernel mismatch"

    # bf16 output path (halves output HBM traffic)
    out_bf16o = jax.block_until_ready(
        arcmargin_subcenter_apply(features, w_bf16, meta_bf16,
                                  out_dtype=jnp.bfloat16))
    assert out_bf16o.dtype == jnp.bfloat16
    assert jnp.allclose(out_bf16o.astype(jnp.float32), ref, atol=3e-2, rtol=0.0), \
        "bf16-output kernel mismatch"

    # --- config 2: exercises multi-tile grid + padding on all axes ----------------
    B2, in2, of2, k2 = 40, 96, 200, 2
    kx2, kw2, key = jax.random.split(key, 3)
    feats2 = jax.random.normal(kx2, (B2, in2), dtype=jnp.float32)
    stdv2 = 1.0 / math.sqrt(in2)
    weight2 = jax.random.uniform(kw2, (of2 * k2, in2), dtype=jnp.float32,
                                 minval=-stdv2, maxval=stdv2)
    ref2 = arcmargin_subcenter_ref(feats2, weight2, of2, k2)
    out2 = jax.block_until_ready(
        arcmargin_subcenter(feats2, weight2, of2, k2,
                            use_bf16=True, b_tile=16, of_tile=128))
    assert out2.shape == (B2, of2)
    assert jnp.allclose(out2, ref2, atol=3e-2, rtol=0.0), "tiled kernel mismatch"

    print("KERNEL_OK")
</pallas_src>

<mosaic_0001>
module attributes {stable_mosaic.version = 11 : i64} {
  func.func @arcmargin_subcenter_kernel(%arg0: i32, %arg1: i32, %arg2: memref<8x128xf32, #tpu.memory_space<vmem>>, %arg3: memref<8x1xf32, #tpu.memory_space<vmem>>, %arg4: memref<3x128x128xf32, #tpu.memory_space<vmem>>, %arg5: memref<8x128xf32, #tpu.memory_space<vmem>>) attributes {dimension_semantics = [#tpu.dimension_semantics<parallel>, #tpu.dimension_semantics<parallel>], iteration_bounds = array<i64: 1, 1>, scalar_prefetch = 0 : i64, scratch_operands = 0 : i64, tpu.core_type = #tpu.core_type<tc>, window_params = [{transform_indices = @transform_0, window_bounds = array<i64: 8, 128>}, {transform_indices = @transform_1, window_bounds = array<i64: 8, 1>}, {transform_indices = @transform_2, window_bounds = array<i64: 3, 128, 128>}, {transform_indices = @transform_3, window_bounds = array<i64: 8, 128>}]} {
    %c0 = arith.constant 0 : index
    %c0_0 = arith.constant 0 : index
    %0 = vector.load %arg2[%c0, %c0_0] : memref<8x128xf32, #tpu.memory_space<vmem>>, vector<8x128xf32>
    %c0_1 = arith.constant 0 : index
    %c0_2 = arith.constant 0 : index
    %c0_3 = arith.constant 0 : index
    %1 = vector.load %arg4[%c0_1, %c0_2, %c0_3] : memref<3x128x128xf32, #tpu.memory_space<vmem>>, vector<1x128x128xf32>
    %2 = vector.shape_cast %1 : vector<1x128x128xf32> to vector<128x128xf32>
    %cst = arith.constant dense<0.000000e+00> : vector<8x128xf32>
    %3 = tpu.matmul %0, %2, %cst {dimension_numbers = #tpu.dot_dimension_numbers<[1], [0], [0], [1], [0, 0, 1, 1], [], []>} : vector<8x128xf32>, vector<128x128xf32>, vector<8x128xf32> -> vector<8x128xf32>
    %c1 = arith.constant 1 : index
    %c0_4 = arith.constant 0 : index
    %c0_5 = arith.constant 0 : index
    %4 = vector.load %arg4[%c1, %c0_4, %c0_5] : memref<3x128x128xf32, #tpu.memory_space<vmem>>, vector<1x128x128xf32>
    %5 = vector.shape_cast %4 : vector<1x128x128xf32> to vector<128x128xf32>
    %cst_6 = arith.constant dense<0.000000e+00> : vector<8x128xf32>
    %6 = tpu.matmul %0, %5, %cst_6 {dimension_numbers = #tpu.dot_dimension_numbers<[1], [0], [0], [1], [0, 0, 1, 1], [], []>} : vector<8x128xf32>, vector<128x128xf32>, vector<8x128xf32> -> vector<8x128xf32>
    %7 = arith.maximumf %3, %6 : vector<8x128xf32>
    %c2 = arith.constant 2 : index
    %c0_7 = arith.constant 0 : index
    %c0_8 = arith.constant 0 : index
    %8 = vector.load %arg4[%c2, %c0_7, %c0_8] : memref<3x128x128xf32, #tpu.memory_space<vmem>>, vector<1x128x128xf32>
    %9 = vector.shape_cast %8 : vector<1x128x128xf32> to vector<128x128xf32>
    %cst_9 = arith.constant dense<0.000000e+00> : vector<8x128xf32>
    %10 = tpu.matmul %0, %9, %cst_9 {dimension_numbers = #tpu.dot_dimension_numbers<[1], [0], [0], [1], [0, 0, 1, 1], [], []>} : vector<8x128xf32>, vector<128x128xf32>, vector<8x128xf32> -> vector<8x128xf32>
    %11 = arith.maximumf %7, %10 : vector<8x128xf32>
    %c0_10 = arith.constant 0 : index
    %c0_11 = arith.constant 0 : index
    %12 = vector.load %arg3[%c0_10, %c0_11] : memref<8x1xf32, #tpu.memory_space<vmem>>, vector<8x1xf32>
    %13 = vector.broadcast %12 : vector<8x1xf32> to vector<8x128xf32>
    %14 = arith.mulf %11, %13 : vector<8x128xf32>
    %c0_12 = arith.constant 0 : index
    %c0_13 = arith.constant 0 : index
    %15 = vector.load %arg5[%c0_12, %c0_13] : memref<8x128xf32, #tpu.memory_space<vmem>>, vector<8x128xf32>
    tpu.vector_store %arg5[%c0_12, %c0_13], %14 {strides = array<i32>} : memref<8x128xf32, #tpu.memory_space<vmem>>, vector<8x128xf32>,
    return
  }
  func.func @transform_0(%arg0: i32, %arg1: i32) -> (i32, i32) {
    %c0_i32 = arith.constant 0 : i32
    %c0_i32_0 = arith.constant 0 : i32
    return %arg1, %c0_i32 : i32, i32
  }
  func.func @transform_1(%arg0: i32, %arg1: i32) -> (i32, i32) {
    %c0_i32 = arith.constant 0 : i32
    %c0_i32_0 = arith.constant 0 : i32
    return %arg1, %c0_i32 : i32, i32
  }
  func.func @transform_2(%arg0: i32, %arg1: i32) -> (i32, i32, i32) {
    %c0_i32 = arith.constant 0 : i32
    %c0_i32_0 = arith.constant 0 : i32
    %c0_i32_1 = arith.constant 0 : i32
    return %c0_i32, %c0_i32_0, %arg0 : i32, i32, i32
  }
  func.func @transform_3(%arg0: i32, %arg1: i32) -> (i32, i32) {
    %c0_i32 = arith.constant 0 : i32
    return %arg1, %arg0 : i32, i32
  }
}

</mosaic_0001>

<llo_original>
// kernel: tpu_custom_call.1
$region0: #{tpu_custom_call.1}
  #allocation0 [shape = 'u32[]', space=smem, size = 0x4, offset = 0x4, fixed_abs, tag = 'smem constant byte address 0x4 - core index']
  #allocation1 [shape = 'u32[144,128]{1,0:T(1,128)}', space=vmem, size = 0x12000, scoped, tag = 'internal scratch']
  %s0 = inlined_call_operand.vmem [shape: f32[8,128], index: 0, kind: input, shape index: {}]
  %s1 = inlined_call_operand.vmem [shape: f32[8,1], index: 1, kind: input, shape index: {}]
  %s2 = inlined_call_operand.hbm [shape: f32[3,128,128], index: 2, kind: input, shape index: {}]
  %s3 = inlined_call_operand.hbm [shape: f32[8,128], index: 3, kind: output, shape index: {}]
  %s4 = sld [smem:[#allocation0]]
  $region26: #{tpu_custom_call.1} parent=0
    _
  %s6 = ssub.s32 1, %s4
  %s7 = scalar_select 0, %s6, %s4
  $region1: #{tpu_custom_call.1} parent=0
    #allocation2 [shape = 'u8[196608]{0}', space=vmem, size = 0x30000, scoped, tag = 'input window, operand 2, single buffered']
    #allocation3 [shape = 's32[1]{0}', space=sflag, size = 0x4, scoped, tag = 'scoped memory for tpu_custom_call.1']
    #allocation4 [shape = 's32[1]{0}', space=sflag, size = 0x4, scoped, tag = 'scoped memory for tpu_custom_call.1']
    #allocation5 [shape = 'u8[4096]{0}', space=vmem, size = 0x1000, scoped, tag = 'output window, operand 0, single buffered']
    %8 = vsyncpa [#allocation3], 0
    %9 = vsyncpa [#allocation4], 0
    // Predicated region
    $region2: #{tpu_custom_call.1} parent=1 // pred_check
      _
    $region3: #{tpu_custom_call.1} parent=1 // pred_check_branch
      %11 = sbr.rel (0) target = $region5
    $region4: #{tpu_custom_call.1} parent=1 // pred_region
      _
    $region5: #{tpu_custom_call.1} parent=1 // pred_fallthru
      _
    // Predicated region
    $region6: #{tpu_custom_call.1} parent=1 // pred_check
      _
    $region7: #{tpu_custom_call.1} parent=1 // pred_check_branch
      %13 = sbr.rel (0) target = $region9
    $region8: #{tpu_custom_call.1} parent=1 // pred_region
      _
    $region9: #{tpu_custom_call.1} parent=1 // pred_fallthru
      _
    // Predicated region
    $region10: #{tpu_custom_call.1} parent=1 // pred_check
      _
    $region11: #{tpu_custom_call.1} parent=1 // pred_check_branch
      %15 = sbr.rel (0) target = $region13
    $region12: #{tpu_custom_call.1} parent=1 // pred_region
      %s17 = ssub.s32 6144, 6144
      %18 = vsyncadd [#allocation3], %s17
      %s19 = sshll.u32 [#allocation2], 4
      %s20 = int_to_ptr.vmem [resolvable:$true] %s19
      %25 = dma.hbm_to_vmem [thread:$0]  %s2, 6144, %s20, [#allocation3], 128, 128, 8
    $region13: #{tpu_custom_call.1} parent=1 // pred_fallthru
      _
    // Predicated region
    $region14: #{tpu_custom_call.1} parent=1 // pred_check
      _
    $region15: #{tpu_custom_call.1} parent=1 // pred_check_branch
      %27 = sbr.rel (0) target = $region17
    $region16: #{tpu_custom_call.1} parent=1 // pred_region
      %28 = dma.done [#allocation3], 6144
    $region17: #{tpu_custom_call.1} parent=1 // pred_fallthru
      _
    %v29 = vld [vmem:[%s0] sm:$0xff]
    %v30 = vld [vmem:[#allocation2] sm:$0xff]
    %v31 = vld [vmem:[#allocation2 + $0x8] sm:$0xff]
    %v32 = vld [vmem:[#allocation2 + $0x10] sm:$0xff]
    %v33 = vld [vmem:[#allocation2 + $0x18] sm:$0xff]
    %v34 = vld [vmem:[#allocation2 + $0x20] sm:$0xff]
    %v35 = vld [vmem:[#allocation2 + $0x28] sm:$0xff]
    %v36 = vld [vmem:[#allocation2 + $0x30] sm:$0xff]
    %v37 = vld [vmem:[#allocation2 + $0x38] sm:$0xff]
    %v38 = vld [vmem:[#allocation2 + $0x40] sm:$0xff]
    %v39 = vld [vmem:[#allocation2 + $0x48] sm:$0xff]
    %v40 = vld [vmem:[#allocation2 + $0x50] sm:$0xff]
    %v41 = vld [vmem:[#allocation2 + $0x58] sm:$0xff]
    %v42 = vld [vmem:[#allocation2 + $0x60] sm:$0xff]
    %v43 = vld [vmem:[#allocation2 + $0x68] sm:$0xff]
    %v44 = vld [vmem:[#allocation2 + $0x70] sm:$0xff]
    %v45 = vld [vmem:[#allocation2 + $0x78] sm:$0xff]
    %46 = vmatprep.subr.mxu0 0.0
    %47 = vmatpush1.msra.mxu0 %v30
    %48 = vmatprep.subr.mxu0 0.0
    %49 = vmatpush1.msra.mxu0 %v31
    %50 = vmatprep.subr.mxu0 0.0
    %51 = vmatpush1.msra.mxu0 %v32
    %52 = vmatprep.subr.mxu0 0.0
    %53 = vmatpush1.msra.mxu0 %v33
    %54 = vmatprep.subr.mxu0 0.0
    %55 = vmatpush1.msra.mxu0 %v34
    %56 = vmatprep.subr.mxu0 0.0
    %57 = vmatpush1.msra.mxu0 %v35
    %58 = vmatprep.subr.mxu0 0.0
    %59 = vmatpush1.msra.mxu0 %v36
    %60 = vmatprep.subr.mxu0 0.0
    %61 = vmatpush1.msra.mxu0 %v37
    %62 = vmatprep.subr.mxu0 0.0
    %63 = vmatpush1.msra.mxu0 %v38
    %64 = vmatprep.subr.mxu0 0.0
    %65 = vmatpush1.msra.mxu0 %v39
    %66 = vmatprep.subr.mxu0 0.0
    %67 = vmatpush1.msra.mxu0 %v40
    %68 = vmatprep.subr.mxu0 0.0
    %69 = vmatpush1.msra.mxu0 %v41
    %70 = vmatprep.subr.mxu0 0.0
    %71 = vmatpush1.msra.mxu0 %v42
    %72 = vmatprep.subr.mxu0 0.0
    %73 = vmatpush1.msra.mxu0 %v43
    %74 = vmatprep.subr.mxu0 0.0
    %75 = vmatpush1.msra.mxu0 %v44
    %76 = vmatprep.subr.mxu0 0.0
    %77 = vmatpush1.msra.mxu0 %v45
    %78 = vmatprep.subr.mxu0 0.0
    %79 = vmatpush1.msra.mxu0 0.0
    %80 = vmatprep.subr.mxu0 0.0
    %81 = vmatpush1.msra.mxu0 0.0
    %82 = vmatprep.subr.mxu0 0.0
    %83 = vmatpush1.msra.mxu0 0.0
    %84 = vmatprep.subr.mxu0 0.0
    %85 = vmatpush1.msra.mxu0 0.0
    %86 = vmatprep.subr.mxu0 0.0
    %87 = vmatpush1.msra.mxu0 0.0
    %88 = vmatprep.subr.mxu0 0.0
    %89 = vmatpush1.msra.mxu0 0.0
    %90 = vmatprep.subr.mxu0 0.0
    %91 = vmatpush1.msra.mxu0 0.0
    %92 = vmatprep.subr.mxu0 0.0
    %93 = vmatpush1.msra.mxu0 0.0
    %94 = vmatprep.subr.mxu0 0.0
    %95 = vmatpush1.msra.mxu0 0.0
    %96 = vmatprep.subr.mxu0 0.0
    %97 = vmatpush1.msra.mxu0 0.0
    %98 = vmatprep.subr.mxu0 0.0
    %99 = vmatpush1.msra.mxu0 0.0
    %100 = vmatprep.subr.mxu0 0.0
    %101 = vmatpush1.msra.mxu0 0.0
    %102 = vmatprep.subr.mxu0 0.0
    %103 = vmatpush1.msra.mxu0 0.0
    %104 = vmatprep.subr.mxu0 0.0
    %105 = vmatpush1.msra.mxu0 0.0
    %106 = vmatprep.subr.mxu0 0.0
    %107 = vmatpush1.msra.mxu0 0.0
    %108 = vmatprep.subr.mxu0 0.0
    %109 = vmatpush1.msra.mxu0 0.0
    %110 = vmatprep.mubr.f32.mxu0 0.0
    %111 = vmatmul.mubr.f32.gmra.mrb[0].mxu0 %v29
    %v112 = vpop.f32.mrb[0].mxu0
    %v113 = vadd.f32 0.0, %v112
    %v114 = vpop.f32.mrb[0].mxu0
    %115 = vdwg.mxu0
    %s116 = scalar_lea.vmem [#allocation2], 128
    %v117 = vld [vmem:[%s116] sm:$0xff]
    %v118 = vld [vmem:[%s116 + $0x8] sm:$0xff]
    %v119 = vld [vmem:[%s116 + $0x10] sm:$0xff]
    %v120 = vld [vmem:[%s116 + $0x18] sm:$0xff]
    %v121 = vld [vmem:[%s116 + $0x20] sm:$0xff]
    %v122 = vld [vmem:[%s116 + $0x28] sm:$0xff]
    %v123 = vld [vmem:[%s116 + $0x30] sm:$0xff]
    %v124 = vld [vmem:[%s116 + $0x38] sm:$0xff]
    %v125 = vld [vmem:[%s116 + $0x40] sm:$0xff]
    %v126 = vld [vmem:[%s116 + $0x48] sm:$0xff]
    %v127 = vld [vmem:[%s116 + $0x50] sm:$0xff]
    %v128 = vld [vmem:[%s116 + $0x58] sm:$0xff]
    %v129 = vld [vmem:[%s116 + $0x60] sm:$0xff]
    %v130 = vld [vmem:[%s116 + $0x68] sm:$0xff]
    %v131 = vld [vmem:[%s116 + $0x70] sm:$0xff]
    %v132 = vld [vmem:[%s116 + $0x78] sm:$0xff]
    %133 = vmatprep.subr.mxu0 0.0
    %134 = vmatpush1.msra.mxu0 %v117
    %135 = vmatprep.subr.mxu0 0.0
    %136 = vmatpush1.msra.mxu0 %v118
    %137 = vmatprep.subr.mxu0 0.0
    %138 = vmatpush1.msra.mxu0 %v119
    %139 = vmatprep.subr.mxu0 0.0
    %140 = vmatpush1.msra.mxu0 %v120
    %141 = vmatprep.subr.mxu0 0.0
    %142 = vmatpush1.msra.mxu0 %v121
    %143 = vmatprep.subr.mxu0 0.0
    %144 = vmatpush1.msra.mxu0 %v122
    %145 = vmatprep.subr.mxu0 0.0
    %146 = vmatpush1.msra.mxu0 %v123
    %147 = vmatprep.subr.mxu0 0.0
    %148 = vmatpush1.msra.mxu0 %v124
    %149 = vmatprep.subr.mxu0 0.0
    %150 = vmatpush1.msra.mxu0 %v125
    %151 = vmatprep.subr.mxu0 0.0
    %152 = vmatpush1.msra.mxu0 %v126
    %153 = vmatprep.subr.mxu0 0.0
    %154 = vmatpush1.msra.mxu0 %v127
    %155 = vmatprep.subr.mxu0 0.0
    %156 = vmatpush1.msra.mxu0 %v128
    %157 = vmatprep.subr.mxu0 0.0
    %158 = vmatpush1.msra.mxu0 %v129
    %159 = vmatprep.subr.mxu0 0.0
    %160 = vmatpush1.msra.mxu0 %v130
    %161 = vmatprep.subr.mxu0 0.0
    %162 = vmatpush1.msra.mxu0 %v131
    %163 = vmatprep.subr.mxu0 0.0
    %164 = vmatpush1.msra.mxu0 %v132
    %165 = vmatprep.subr.mxu0 0.0
    %166 = vmatpush1.msra.mxu0 0.0
    %167 = vmatprep.subr.mxu0 0.0
    %168 = vmatpush1.msra.mxu0 0.0
    %169 = vmatprep.subr.mxu0 0.0
    %170 = vmatpush1.msra.mxu0 0.0
    %171 = vmatprep.subr.mxu0 0.0
    %172 = vmatpush1.msra.mxu0 0.0
    %173 = vmatprep.subr.mxu0 0.0
    %174 = vmatpush1.msra.mxu0 0.0
    %175 = vmatprep.subr.mxu0 0.0
    %176 = vmatpush1.msra.mxu0 0.0
    %177 = vmatprep.subr.mxu0 0.0
    %178 = vmatpush1.msra.mxu0 0.0
    %179 = vmatprep.subr.mxu0 0.0
    %180 = vmatpush1.msra.mxu0 0.0
    %181 = vmatprep.subr.mxu0 0.0
    %182 = vmatpush1.msra.mxu0 0.0
    %183 = vmatprep.subr.mxu0 0.0
    %184 = vmatpush1.msra.mxu0 0.0
    %185 = vmatprep.subr.mxu0 0.0
    %186 = vmatpush1.msra.mxu0 0.0
    %187 = vmatprep.subr.mxu0 0.0
    %188 = vmatpush1.msra.mxu0 0.0
    %189 = vmatprep.subr.mxu0 0.0
    %190 = vmatpush1.msra.mxu0 0.0
    %191 = vmatprep.subr.mxu0 0.0
    %192 = vmatpush1.msra.mxu0 0.0
    %193 = vmatprep.subr.mxu0 0.0
    %194 = vmatpush1.msra.mxu0 0.0
    %195 = vmatprep.subr.mxu0 0.0
    %196 = vmatpush1.msra.mxu0 0.0
    %197 = vmatprep.mubr.f32.mxu0 0.0
    %198 = vmatmul.mubr.f32.gmra.mrb[0].mxu0 %v29
    %v199 = vpop.f32.mrb[0].mxu0
    %v200 = vadd.f32 0.0, %v199
    %v201 = vpop.f32.mrb[0].mxu0
    %202 = vdwg.mxu0
    %v203 = vmax.f32 %v113, %v200
    %s204 = scalar_lea.vmem [#allocation2], 256
    %v205 = vld [vmem:[%s204] sm:$0xff]
    %v206 = vld [vmem:[%s204 + $0x8] sm:$0xff]
    %v207 = vld [vmem:[%s204 + $0x10] sm:$0xff]
    %v208 = vld [vmem:[%s204 + $0x18] sm:$0xff]
    %v209 = vld [vmem:[%s204 + $0x20] sm:$0xff]
    %v210 = vld [vmem:[%s204 + $0x28] sm:$0xff]
    %v211 = vld [vmem:[%s204 + $0x30] sm:$0xff]
    %v212 = vld [vmem:[%s204 + $0x38] sm:$0xff]
    %v213 = vld [vmem:[%s204 + $0x40] sm:$0xff]
    %v214 = vld [vmem:[%s204 + $0x48] sm:$0xff]
    %v215 = vld [vmem:[%s204 + $0x50] sm:$0xff]
    %v216 = vld [vmem:[%s204 + $0x58] sm:$0xff]
    %v217 = vld [vmem:[%s204 + $0x60] sm:$0xff]
    %v218 = vld [vmem:[%s204 + $0x68] sm:$0xff]
    %v219 = vld [vmem:[%s204 + $0x70] sm:$0xff]
    %v220 = vld [vmem:[%s204 + $0x78] sm:$0xff]
    %221 = vmatprep.subr.mxu0 0.0
    %222 = vmatpush1.msra.mxu0 %v205
    %223 = vmatprep.subr.mxu0 0.0
    %224 = vmatpush1.msra.mxu0 %v206
    %225 = vmatprep.subr.mxu0 0.0
    %226 = vmatpush1.msra.mxu0 %v207
    %227 = vmatprep.subr.mxu0 0.0
    %228 = vmatpush1.msra.mxu0 %v208
    %229 = vmatprep.subr.mxu0 0.0
    %230 = vmatpush1.msra.mxu0 %v209
    %231 = vmatprep.subr.mxu0 0.0
    %232 = vmatpush1.msra.mxu0 %v210
    %233 = vmatprep.subr.mxu0 0.0
    %234 = vmatpush1.msra.mxu0 %v211
    %235 = vmatprep.subr.mxu0 0.0
    %236 = vmatpush1.msra.mxu0 %v212
    %237 = vmatprep.subr.mxu0 0.0
    %238 = vmatpush1.msra.mxu0 %v213
    %239 = vmatprep.subr.mxu0 0.0
    %240 = vmatpush1.msra.mxu0 %v214
    %241 = vmatprep.subr.mxu0 0.0
    %242 = vmatpush1.msra.mxu0 %v215
    %243 = vmatprep.subr.mxu0 0.0
    %244 = vmatpush1.msra.mxu0 %v216
    %245 = vmatprep.subr.mxu0 0.0
    %246 = vmatpush1.msra.mxu0 %v217
    %247 = vmatprep.subr.mxu0 0.0
    %248 = vmatpush1.msra.mxu0 %v218
    %249 = vmatprep.subr.mxu0 0.0
    %250 = vmatpush1.msra.mxu0 %v219
    %251 = vmatprep.subr.mxu0 0.0
    %252 = vmatpush1.msra.mxu0 %v220
    %253 = vmatprep.subr.mxu0 0.0
    %254 = vmatpush1.msra.mxu0 0.0
    %255 = vmatprep.subr.mxu0 0.0
    %256 = vmatpush1.msra.mxu0 0.0
    %257 = vmatprep.subr.mxu0 0.0
    %258 = vmatpush1.msra.mxu0 0.0
    %259 = vmatprep.subr.mxu0 0.0
    %260 = vmatpush1.msra.mxu0 0.0
    %261 = vmatprep.subr.mxu0 0.0
    %262 = vmatpush1.msra.mxu0 0.0
    %263 = vmatprep.subr.mxu0 0.0
    %264 = vmatpush1.msra.mxu0 0.0
    %265 = vmatprep.subr.mxu0 0.0
    %266 = vmatpush1.msra.mxu0 0.0
    %267 = vmatprep.subr.mxu0 0.0
    %268 = vmatpush1.msra.mxu0 0.0
    %269 = vmatprep.subr.mxu0 0.0
    %270 = vmatpush1.msra.mxu0 0.0
    %271 = vmatprep.subr.mxu0 0.0
    %272 = vmatpush1.msra.mxu0 0.0
    %273 = vmatprep.subr.mxu0 0.0
    %274 = vmatpush1.msra.mxu0 0.0
    %275 = vmatprep.subr.mxu0 0.0
    %276 = vmatpush1.msra.mxu0 0.0
    %277 = vmatprep.subr.mxu0 0.0
    %278 = vmatpush1.msra.mxu0 0.0
    %279 = vmatprep.subr.mxu0 0.0
    %280 = vmatpush1.msra.mxu0 0.0
    %281 = vmatprep.subr.mxu0 0.0
    %282 = vmatpush1.msra.mxu0 0.0
    %283 = vmatprep.subr.mxu0 0.0
    %284 = vmatpush1.msra.mxu0 0.0
    %285 = vmatprep.mubr.f32.mxu0 0.0
    %286 = vmatmul.mubr.f32.gmra.mrb[0].mxu0 %v29
    %v287 = vpop.f32.mrb[0].mxu0
    %v288 = vadd.f32 0.0, %v287
    %v289 = vpop.f32.mrb[0].mxu0
    %290 = vdwg.mxu0
    %v291 = vmax.f32 %v203, %v288
    %v292 = vld [vmem:[%s1] sm:$0xff]
    %294 = vset.pattern.permute.xlu0 0
    %295 = vperm.xlu0 %294, %v292
    %v296 = vpop.permute.xlu0 %295
    %v298 = vmul.f32 %v291, %v296
    %299 = vst [vmem:[#allocation5] sm:$0xff] %v298
    // Predicated region
    $region18: #{tpu_custom_call.1} parent=1 // pred_check
      _
    $region19: #{tpu_custom_call.1} parent=1 // pred_check_branch
      %301 = sbr.rel (0) target = $region21
    $region20: #{tpu_custom_call.1} parent=1 // pred_region
      %s303 = ssub.s32 128, 128
      %304 = vsyncadd [#allocation4], %s303
      %s306 = sshll.u32 [#allocation5], 4
      %s307 = int_to_ptr.vmem [resolvable:$true] %s306
      %309 = dma.vmem_to_hbm [thread:$0]  %s307, 128, %s3, [#allocation4]
    $region21: #{tpu_custom_call.1} parent=1 // pred_fallthru
      _
    // Predicated region
    $region22: #{tpu_custom_call.1} parent=1 // pred_check
      _
    $region23: #{tpu_custom_call.1} parent=1 // pred_check_branch
      %311 = sbr.rel (0) target = $region25
    $region24: #{tpu_custom_call.1} parent=1 // pred_region
      %312 = dma.done [#allocation4], 128
    $region25: #{tpu_custom_call.1} parent=1 // pred_fallthru
      _
    %313 = vsyncpa [#allocation3], 1
    %314 = vsyncpa [#allocation4], 1

</llo_original>
